<compile_context>
chip_gen: v7x
topology: tpu7x:2x2x1
jax: 0.10.0
libtpu: 0.0.40
codegen_flags: <defaults>
</compile_context>

<pallas_src>
import functools

import numpy as np

import jax
import jax.numpy as jnp
from jax.experimental import pallas as pl
from jax.experimental.pallas import tpu as pltpu


def _make_tap_masks(height, width):
    """(9, H*W) f32 masks: 1 where the 3x3 tap (dy, dx) reads an in-bounds pixel."""
    masks = np.zeros((9, height * width), np.float32)
    for dy in range(3):
        for dx in range(3):
            ok_y = (np.arange(height) + dy - 1 >= 0) & (np.arange(height) + dy - 1 < height)
            ok_x = (np.arange(width) + dx - 1 >= 0) & (np.arange(width) + dx - 1 < width)
            masks[dy * 3 + dx] = (ok_y[:, None] & ok_x[None, :]).astype(np.float32).reshape(-1)
    return jnp.asarray(masks)


def _fused_conv3x3_kernel(x_ref, mask_ref, w1_ref, b1_ref, w2_ref, b2_ref,
                          o_ref, *, n_batch, height, width, c_in, c_mid, c_out):
    # x_ref:    (n_batch*c_in, H*W)   flat NCHW channel planes (lanes = H*W)
    # mask_ref: (9, H*W)              per-tap boundary-validity masks
    # w1_ref:   (c_mid, 9*c_in)       column k = (dy*3+dx)*c_in + ci
    # b1_ref:   (c_mid, 1)
    # w2_ref:   (c_out, 9*c_mid)
    # b2_ref:   (c_out, 1)
    # o_ref:    (n_batch*c_out, H*W)  flat NCHW output planes (lane-dense store)
    f_spatial = height * width
    pad_w = 128  # lane-aligned zero margin, >= max |tap offset| = width + 1

    masks = mask_ref[...]
    x_all = x_ref[...]
    w1 = w1_ref[...]
    b1 = b1_ref[...]
    w2 = w2_ref[...]
    b2 = b2_ref[...]

    def im2col(planes):
        # planes: (C, H*W) -> (9*C, H*W); row k = (dy*3+dx)*C + ci holds the
        # (dy, dx)-shifted, zero-padded plane of channel ci.
        c = planes.shape[0]
        zpad = jnp.zeros((c, pad_w), planes.dtype)
        padded = jnp.concatenate([zpad, planes, zpad], axis=-1)  # aligned concat
        blocks = []
        for dy in range(3):
            for dx in range(3):
                t = dy * 3 + dx
                off = (dy - 1) * width + (dx - 1)
                shifted = padded[:, pad_w + off: pad_w + off + f_spatial]
                blocks.append(shifted * masks[t:t + 1, :])
        return jnp.concatenate(blocks, axis=0)

    outs = []
    for n in range(n_batch):  # tiny static batch; unrolled
        x_n = x_all[n * c_in:(n + 1) * c_in, :]                       # (c_in, F)
        h_n = jnp.dot(w1, im2col(x_n),
                      preferred_element_type=jnp.float32) + b1         # (c_mid, F)
        h_n = jnp.maximum(h_n, 0.0)                                    # ReLU
        y_n = jnp.dot(w2, im2col(h_n),
                      preferred_element_type=jnp.float32) + b2         # (c_out, F)
        outs.append(y_n)
    o_ref[...] = jnp.concatenate(outs, axis=0).astype(o_ref.dtype)     # (N*c_out, F)


def fused_simple_conv(x_nchw, params):
    n, c_in, height, width = x_nchw.shape
    w1, b1, w2, b2 = params["w1"], params["b1"], params["w2"], params["b2"]
    c_mid = w1.shape[0]
    c_out = w2.shape[0]
    f_spatial = height * width

    kernel = functools.partial(
        _fused_conv3x3_kernel, n_batch=n, height=height, width=width,
        c_in=c_in, c_mid=c_mid, c_out=c_out)
    vmem = pl.BlockSpec(memory_space=pltpu.MemorySpace.VMEM)
    out_flat = pl.pallas_call(
        kernel,
        out_shape=jax.ShapeDtypeStruct((n * c_out, f_spatial), x_nchw.dtype),
        in_specs=[vmem] * 6,
        out_specs=vmem,
    )(
        x_nchw.reshape(n * c_in, f_spatial),  # pure reshape of NCHW; no pad/transpose
        _make_tap_masks(height, width),       # compile-time constant masks
        w1, b1.reshape(c_mid, 1),
        w2, b2.reshape(c_out, 1),
    )
    return out_flat.reshape(n, c_out, height, width)  # free reshape back to NCHW


@jax.jit
def simple_conv_model(x_nchw, params):
    return fused_simple_conv(x_nchw, params)


def init_params(key):
    """Deterministic init matching nn.Conv2d shapes, stored in matmul layout.

    conv1: weight (6,3,3,3) OIHW, bias (6,); conv2: weight (6,6,3,3), bias (6,).
    Weights are rearranged once to (Cout, 9*Cin) with column (dy*3+dx)*Cin + ci,
    matching the kernel's in-kernel im2col row ordering.
    """
    c_in, c_mid, c_out = 3, 6, 6
    k1, k2, k3, k4 = jax.random.split(key, 4)
    bound1 = 1.0 / float(np.sqrt(c_in * 9))
    bound2 = 1.0 / float(np.sqrt(c_mid * 9))
    w1_oihw = jax.random.uniform(k1, (c_mid, c_in, 3, 3), jnp.float32, -bound1, bound1)
    b1 = jax.random.uniform(k2, (c_mid,), jnp.float32, -bound1, bound1)
    w2_oihw = jax.random.uniform(k3, (c_out, c_mid, 3, 3), jnp.float32, -bound2, bound2)
    b2 = jax.random.uniform(k4, (c_out,), jnp.float32, -bound2, bound2)
    return {
        "w1": jnp.transpose(w1_oihw, (0, 2, 3, 1)).reshape(c_mid, 9 * c_in),
        "b1": b1,
        "w2": jnp.transpose(w2_oihw, (0, 2, 3, 1)).reshape(c_out, 9 * c_mid),
        "b2": b2,
    }


def _reference(x_nchw, params):
    """Pure-JAX reference (lax conv) for a correctness check."""
    c_mid = params["w1"].shape[0]
    c_in = params["w1"].shape[1] // 9
    c_out = params["w2"].shape[0]
    w1 = params["w1"].reshape(c_mid, 3, 3, c_in).transpose(0, 3, 1, 2)   # -> OIHW
    w2 = params["w2"].reshape(c_out, 3, 3, c_mid).transpose(0, 3, 1, 2)
    dn = jax.lax.conv_dimension_numbers(x_nchw.shape, w1.shape,
                                        ("NCHW", "OIHW", "NCHW"))
    y = jax.lax.conv_general_dilated(x_nchw, w1, (1, 1), "SAME",
                                     dimension_numbers=dn)
    y = jnp.maximum(y + params["b1"][None, :, None, None], 0.0)
    y = jax.lax.conv_general_dilated(y, w2, (1, 1), "SAME",
                                     dimension_numbers=dn)
    return y + params["b2"][None, :, None, None]


if __name__ == "__main__":
    key = jax.random.PRNGKey(0)
    k_x, k_p = jax.random.split(key)
    # Module implies 3 input channels; small NCHW input: batch=2, 3x16x16.
    x = jax.random.normal(k_x, (2, 3, 16, 16), jnp.float32)
    params = init_params(k_p)

    out = jax.block_until_ready(simple_conv_model(x, params))
    ref = _reference(x, params)

    assert out.shape == (2, 6, 16, 16)
    assert jnp.allclose(out, ref, atol=1e-4, rtol=1e-4), float(
        jnp.max(jnp.abs(out - ref)))

    print("KERNEL_OK")
</pallas_src>

<mosaic_0001>
module attributes {stable_mosaic.version = 11 : i64} {
  func.func @_fused_conv3x3_kernel(%arg0: memref<6x256xf32, #tpu.memory_space<vmem>>, %arg1: memref<9x256xf32, #tpu.memory_space<vmem>>, %arg2: memref<6x27xf32, #tpu.memory_space<vmem>>, %arg3: memref<6x1xf32, #tpu.memory_space<vmem>>, %arg4: memref<6x54xf32, #tpu.memory_space<vmem>>, %arg5: memref<6x1xf32, #tpu.memory_space<vmem>>, %arg6: memref<12x256xf32, #tpu.memory_space<vmem>>) attributes {dimension_semantics = [], scalar_prefetch = 0 : i64, scratch_operands = 0 : i64, tpu.core_type = #tpu.core_type<tc>} {
    %c0 = arith.constant 0 : index
    %c0_0 = arith.constant 0 : index
    %0 = vector.load %arg1[%c0, %c0_0] : memref<9x256xf32, #tpu.memory_space<vmem>>, vector<9x256xf32>
    %c0_1 = arith.constant 0 : index
    %c0_2 = arith.constant 0 : index
    %1 = vector.load %arg0[%c0_1, %c0_2] : memref<6x256xf32, #tpu.memory_space<vmem>>, vector<6x256xf32>
    %c0_3 = arith.constant 0 : index
    %c0_4 = arith.constant 0 : index
    %2 = vector.load %arg2[%c0_3, %c0_4] : memref<6x27xf32, #tpu.memory_space<vmem>>, vector<6x27xf32>
    %c0_5 = arith.constant 0 : index
    %c0_6 = arith.constant 0 : index
    %3 = vector.load %arg3[%c0_5, %c0_6] : memref<6x1xf32, #tpu.memory_space<vmem>>, vector<6x1xf32>
    %c0_7 = arith.constant 0 : index
    %c0_8 = arith.constant 0 : index
    %4 = vector.load %arg4[%c0_7, %c0_8] : memref<6x54xf32, #tpu.memory_space<vmem>>, vector<6x54xf32>
    %c0_9 = arith.constant 0 : index
    %c0_10 = arith.constant 0 : index
    %5 = vector.load %arg5[%c0_9, %c0_10] : memref<6x1xf32, #tpu.memory_space<vmem>>, vector<6x1xf32>
    %6 = vector.extract_strided_slice %1 {offsets = [0, 0], sizes = [3, 256], strides = [1, 1]} : vector<6x256xf32> to vector<3x256xf32>
    %cst = arith.constant 0.000000e+00 : f32
    %7 = vector.broadcast %cst : f32 to vector<3x128xf32>
    %8 = tpu.concatenate %7, %6, %7 in 1 : vector<3x128xf32>, vector<3x256xf32>, vector<3x128xf32> -> vector<3x512xf32>
    %9 = vector.extract_strided_slice %8 {offsets = [0, 111], sizes = [3, 256], strides = [1, 1]} : vector<3x512xf32> to vector<3x256xf32>
    %10 = vector.extract_strided_slice %0 {offsets = [0, 0], sizes = [1, 256], strides = [1, 1]} : vector<9x256xf32> to vector<1x256xf32>
    %11 = vector.broadcast %10 : vector<1x256xf32> to vector<3x256xf32>
    %12 = arith.mulf %9, %11 : vector<3x256xf32>
    %13 = vector.extract_strided_slice %8 {offsets = [0, 112], sizes = [3, 256], strides = [1, 1]} : vector<3x512xf32> to vector<3x256xf32>
    %14 = vector.extract_strided_slice %0 {offsets = [1, 0], sizes = [1, 256], strides = [1, 1]} : vector<9x256xf32> to vector<1x256xf32>
    %15 = vector.broadcast %14 : vector<1x256xf32> to vector<3x256xf32>
    %16 = arith.mulf %13, %15 : vector<3x256xf32>
    %17 = vector.extract_strided_slice %8 {offsets = [0, 113], sizes = [3, 256], strides = [1, 1]} : vector<3x512xf32> to vector<3x256xf32>
    %18 = vector.extract_strided_slice %0 {offsets = [2, 0], sizes = [1, 256], strides = [1, 1]} : vector<9x256xf32> to vector<1x256xf32>
    %19 = vector.broadcast %18 : vector<1x256xf32> to vector<3x256xf32>
    %20 = arith.mulf %17, %19 : vector<3x256xf32>
    %21 = vector.extract_strided_slice %8 {offsets = [0, 127], sizes = [3, 256], strides = [1, 1]} : vector<3x512xf32> to vector<3x256xf32>
    %22 = vector.extract_strided_slice %0 {offsets = [3, 0], sizes = [1, 256], strides = [1, 1]} : vector<9x256xf32> to vector<1x256xf32>
    %23 = vector.broadcast %22 : vector<1x256xf32> to vector<3x256xf32>
    %24 = arith.mulf %21, %23 : vector<3x256xf32>
    %25 = vector.extract_strided_slice %8 {offsets = [0, 128], sizes = [3, 256], strides = [1, 1]} : vector<3x512xf32> to vector<3x256xf32>
    %26 = vector.extract_strided_slice %0 {offsets = [4, 0], sizes = [1, 256], strides = [1, 1]} : vector<9x256xf32> to vector<1x256xf32>
    %27 = vector.broadcast %26 : vector<1x256xf32> to vector<3x256xf32>
    %28 = arith.mulf %25, %27 : vector<3x256xf32>
    %29 = vector.extract_strided_slice %8 {offsets = [0, 129], sizes = [3, 256], strides = [1, 1]} : vector<3x512xf32> to vector<3x256xf32>
    %30 = vector.extract_strided_slice %0 {offsets = [5, 0], sizes = [1, 256], strides = [1, 1]} : vector<9x256xf32> to vector<1x256xf32>
    %31 = vector.broadcast %30 : vector<1x256xf32> to vector<3x256xf32>
    %32 = arith.mulf %29, %31 : vector<3x256xf32>
    %33 = vector.extract_strided_slice %8 {offsets = [0, 143], sizes = [3, 256], strides = [1, 1]} : vector<3x512xf32> to vector<3x256xf32>
    %34 = vector.extract_strided_slice %0 {offsets = [6, 0], sizes = [1, 256], strides = [1, 1]} : vector<9x256xf32> to vector<1x256xf32>
    %35 = vector.broadcast %34 : vector<1x256xf32> to vector<3x256xf32>
    %36 = arith.mulf %33, %35 : vector<3x256xf32>
    %37 = vector.extract_strided_slice %8 {offsets = [0, 144], sizes = [3, 256], strides = [1, 1]} : vector<3x512xf32> to vector<3x256xf32>
    %38 = vector.extract_strided_slice %0 {offsets = [7, 0], sizes = [1, 256], strides = [1, 1]} : vector<9x256xf32> to vector<1x256xf32>
    %39 = vector.broadcast %38 : vector<1x256xf32> to vector<3x256xf32>
    %40 = arith.mulf %37, %39 : vector<3x256xf32>
    %41 = vector.extract_strided_slice %8 {offsets = [0, 145], sizes = [3, 256], strides = [1, 1]} : vector<3x512xf32> to vector<3x256xf32>
    %42 = vector.extract_strided_slice %0 {offsets = [8, 0], sizes = [1, 256], strides = [1, 1]} : vector<9x256xf32> to vector<1x256xf32>
    %43 = vector.broadcast %42 : vector<1x256xf32> to vector<3x256xf32>
    %44 = arith.mulf %41, %43 : vector<3x256xf32>
    %45 = tpu.concatenate %12, %16, %20, %24, %28, %32, %36, %40, %44 in 0 : vector<3x256xf32>, vector<3x256xf32>, vector<3x256xf32>, vector<3x256xf32>, vector<3x256xf32>, vector<3x256xf32>, vector<3x256xf32>, vector<3x256xf32>, vector<3x256xf32> -> vector<27x256xf32>
    %cst_11 = arith.constant dense<0.000000e+00> : vector<6x256xf32>
    %46 = tpu.matmul %2, %45, %cst_11 {dimension_numbers = #tpu.dot_dimension_numbers<[1], [0], [0], [1], [0, 0, 1, 1], [], []>} : vector<6x27xf32>, vector<27x256xf32>, vector<6x256xf32> -> vector<6x256xf32>
    %47 = vector.broadcast %3 : vector<6x1xf32> to vector<6x256xf32>
    %48 = arith.addf %46, %47 : vector<6x256xf32>
    %cst_12 = arith.constant 0.000000e+00 : f32
    %49 = vector.broadcast %cst_12 : f32 to vector<6x256xf32>
    %50 = arith.maximumf %48, %49 : vector<6x256xf32>
    %cst_13 = arith.constant 0.000000e+00 : f32
    %51 = vector.broadcast %cst_13 : f32 to vector<6x128xf32>
    %52 = tpu.concatenate %51, %50, %51 in 1 : vector<6x128xf32>, vector<6x256xf32>, vector<6x128xf32> -> vector<6x512xf32>
    %53 = vector.extract_strided_slice %52 {offsets = [0, 111], sizes = [6, 256], strides = [1, 1]} : vector<6x512xf32> to vector<6x256xf32>
    %54 = vector.extract_strided_slice %0 {offsets = [0, 0], sizes = [1, 256], strides = [1, 1]} : vector<9x256xf32> to vector<1x256xf32>
    %55 = vector.broadcast %54 : vector<1x256xf32> to vector<6x256xf32>
    %56 = arith.mulf %53, %55 : vector<6x256xf32>
    %57 = vector.extract_strided_slice %52 {offsets = [0, 112], sizes = [6, 256], strides = [1, 1]} : vector<6x512xf32> to vector<6x256xf32>
    %58 = vector.extract_strided_slice %0 {offsets = [1, 0], sizes = [1, 256], strides = [1, 1]} : vector<9x256xf32> to vector<1x256xf32>
    %59 = vector.broadcast %58 : vector<1x256xf32> to vector<6x256xf32>
    %60 = arith.mulf %57, %59 : vector<6x256xf32>
    %61 = vector.extract_strided_slice %52 {offsets = [0, 113], sizes = [6, 256], strides = [1, 1]} : vector<6x512xf32> to vector<6x256xf32>
    %62 = vector.extract_strided_slice %0 {offsets = [2, 0], sizes = [1, 256], strides = [1, 1]} : vector<9x256xf32> to vector<1x256xf32>
    %63 = vector.broadcast %62 : vector<1x256xf32> to vector<6x256xf32>
    %64 = arith.mulf %61, %63 : vector<6x256xf32>
    %65 = vector.extract_strided_slice %52 {offsets = [0, 127], sizes = [6, 256], strides = [1, 1]} : vector<6x512xf32> to vector<6x256xf32>
    %66 = vector.extract_strided_slice %0 {offsets = [3, 0], sizes = [1, 256], strides = [1, 1]} : vector<9x256xf32> to vector<1x256xf32>
    %67 = vector.broadcast %66 : vector<1x256xf32> to vector<6x256xf32>
    %68 = arith.mulf %65, %67 : vector<6x256xf32>
    %69 = vector.extract_strided_slice %52 {offsets = [0, 128], sizes = [6, 256], strides = [1, 1]} : vector<6x512xf32> to vector<6x256xf32>
    %70 = vector.extract_strided_slice %0 {offsets = [4, 0], sizes = [1, 256], strides = [1, 1]} : vector<9x256xf32> to vector<1x256xf32>
    %71 = vector.broadcast %70 : vector<1x256xf32> to vector<6x256xf32>
    %72 = arith.mulf %69, %71 : vector<6x256xf32>
    %73 = vector.extract_strided_slice %52 {offsets = [0, 129], sizes = [6, 256], strides = [1, 1]} : vector<6x512xf32> to vector<6x256xf32>
    %74 = vector.extract_strided_slice %0 {offsets = [5, 0], sizes = [1, 256], strides = [1, 1]} : vector<9x256xf32> to vector<1x256xf32>
    %75 = vector.broadcast %74 : vector<1x256xf32> to vector<6x256xf32>
    %76 = arith.mulf %73, %75 : vector<6x256xf32>
    %77 = vector.extract_strided_slice %52 {offsets = [0, 143], sizes = [6, 256], strides = [1, 1]} : vector<6x512xf32> to vector<6x256xf32>
    %78 = vector.extract_strided_slice %0 {offsets = [6, 0], sizes = [1, 256], strides = [1, 1]} : vector<9x256xf32> to vector<1x256xf32>
    %79 = vector.broadcast %78 : vector<1x256xf32> to vector<6x256xf32>
    %80 = arith.mulf %77, %79 : vector<6x256xf32>
    %81 = vector.extract_strided_slice %52 {offsets = [0, 144], sizes = [6, 256], strides = [1, 1]} : vector<6x512xf32> to vector<6x256xf32>
    %82 = vector.extract_strided_slice %0 {offsets = [7, 0], sizes = [1, 256], strides = [1, 1]} : vector<9x256xf32> to vector<1x256xf32>
    %83 = vector.broadcast %82 : vector<1x256xf32> to vector<6x256xf32>
    %84 = arith.mulf %81, %83 : vector<6x256xf32>
    %85 = vector.extract_strided_slice %52 {offsets = [0, 145], sizes = [6, 256], strides = [1, 1]} : vector<6x512xf32> to vector<6x256xf32>
    %86 = vector.extract_strided_slice %0 {offsets = [8, 0], sizes = [1, 256], strides = [1, 1]} : vector<9x256xf32> to vector<1x256xf32>
    %87 = vector.broadcast %86 : vector<1x256xf32> to vector<6x256xf32>
    %88 = arith.mulf %85, %87 : vector<6x256xf32>
    %89 = tpu.concatenate %56, %60, %64, %68, %72, %76, %80, %84, %88 in 0 : vector<6x256xf32>, vector<6x256xf32>, vector<6x256xf32>, vector<6x256xf32>, vector<6x256xf32>, vector<6x256xf32>, vector<6x256xf32>, vector<6x256xf32>, vector<6x256xf32> -> vector<54x256xf32>
    %cst_14 = arith.constant dense<0.000000e+00> : vector<6x256xf32>
    %90 = tpu.matmul %4, %89, %cst_14 {dimension_numbers = #tpu.dot_dimension_numbers<[1], [0], [0], [1], [0, 0, 1, 1], [], []>} : vector<6x54xf32>, vector<54x256xf32>, vector<6x256xf32> -> vector<6x256xf32>
    %91 = vector.broadcast %5 : vector<6x1xf32> to vector<6x256xf32>
    %92 = arith.addf %90, %91 : vector<6x256xf32>
    %93 = vector.extract_strided_slice %1 {offsets = [3, 0], sizes = [3, 256], strides = [1, 1]} : vector<6x256xf32> to vector<3x256xf32>
    %cst_15 = arith.constant 0.000000e+00 : f32
    %94 = vector.broadcast %cst_15 : f32 to vector<3x128xf32>
    %95 = tpu.concatenate %94, %93, %94 in 1 : vector<3x128xf32>, vector<3x256xf32>, vector<3x128xf32> -> vector<3x512xf32>
    %96 = vector.extract_strided_slice %95 {offsets = [0, 111], sizes = [3, 256], strides = [1, 1]} : vector<3x512xf32> to vector<3x256xf32>
    %97 = vector.extract_strided_slice %0 {offsets = [0, 0], sizes = [1, 256], strides = [1, 1]} : vector<9x256xf32> to vector<1x256xf32>
    %98 = vector.broadcast %97 : vector<1x256xf32> to vector<3x256xf32>
    %99 = arith.mulf %96, %98 : vector<3x256xf32>
    %100 = vector.extract_strided_slice %95 {offsets = [0, 112], sizes = [3, 256], strides = [1, 1]} : vector<3x512xf32> to vector<3x256xf32>
    %101 = vector.extract_strided_slice %0 {offsets = [1, 0], sizes = [1, 256], strides = [1, 1]} : vector<9x256xf32> to vector<1x256xf32>
    %102 = vector.broadcast %101 : vector<1x256xf32> to vector<3x256xf32>
    %103 = arith.mulf %100, %102 : vector<3x256xf32>
    %104 = vector.extract_strided_slice %95 {offsets = [0, 113], sizes = [3, 256], strides = [1, 1]} : vector<3x512xf32> to vector<3x256xf32>
    %105 = vector.extract_strided_slice %0 {offsets = [2, 0], sizes = [1, 256], strides = [1, 1]} : vector<9x256xf32> to vector<1x256xf32>
    %106 = vector.broadcast %105 : vector<1x256xf32> to vector<3x256xf32>
    %107 = arith.mulf %104, %106 : vector<3x256xf32>
    %108 = vector.extract_strided_slice %95 {offsets = [0, 127], sizes = [3, 256], strides = [1, 1]} : vector<3x512xf32> to vector<3x256xf32>
    %109 = vector.extract_strided_slice %0 {offsets = [3, 0], sizes = [1, 256], strides = [1, 1]} : vector<9x256xf32> to vector<1x256xf32>
    %110 = vector.broadcast %109 : vector<1x256xf32> to vector<3x256xf32>
    %111 = arith.mulf %108, %110 : vector<3x256xf32>
    %112 = vector.extract_strided_slice %95 {offsets = [0, 128], sizes = [3, 256], strides = [1, 1]} : vector<3x512xf32> to vector<3x256xf32>
    %113 = vector.extract_strided_slice %0 {offsets = [4, 0], sizes = [1, 256], strides = [1, 1]} : vector<9x256xf32> to vector<1x256xf32>
    %114 = vector.broadcast %113 : vector<1x256xf32> to vector<3x256xf32>
    %115 = arith.mulf %112, %114 : vector<3x256xf32>
    %116 = vector.extract_strided_slice %95 {offsets = [0, 129], sizes = [3, 256], strides = [1, 1]} : vector<3x512xf32> to vector<3x256xf32>
    %117 = vector.extract_strided_slice %0 {offsets = [5, 0], sizes = [1, 256], strides = [1, 1]} : vector<9x256xf32> to vector<1x256xf32>
    %118 = vector.broadcast %117 : vector<1x256xf32> to vector<3x256xf32>
    %119 = arith.mulf %116, %118 : vector<3x256xf32>
    %120 = vector.extract_strided_slice %95 {offsets = [0, 143], sizes = [3, 256], strides = [1, 1]} : vector<3x512xf32> to vector<3x256xf32>
    %121 = vector.extract_strided_slice %0 {offsets = [6, 0], sizes = [1, 256], strides = [1, 1]} : vector<9x256xf32> to vector<1x256xf32>
    %122 = vector.broadcast %121 : vector<1x256xf32> to vector<3x256xf32>
    %123 = arith.mulf %120, %122 : vector<3x256xf32>
    %124 = vector.extract_strided_slice %95 {offsets = [0, 144], sizes = [3, 256], strides = [1, 1]} : vector<3x512xf32> to vector<3x256xf32>
    %125 = vector.extract_strided_slice %0 {offsets = [7, 0], sizes = [1, 256], strides = [1, 1]} : vector<9x256xf32> to vector<1x256xf32>
    %126 = vector.broadcast %125 : vector<1x256xf32> to vector<3x256xf32>
    %127 = arith.mulf %124, %126 : vector<3x256xf32>
    %128 = vector.extract_strided_slice %95 {offsets = [0, 145], sizes = [3, 256], strides = [1, 1]} : vector<3x512xf32> to vector<3x256xf32>
    %129 = vector.extract_strided_slice %0 {offsets = [8, 0], sizes = [1, 256], strides = [1, 1]} : vector<9x256xf32> to vector<1x256xf32>
    %130 = vector.broadcast %129 : vector<1x256xf32> to vector<3x256xf32>
    %131 = arith.mulf %128, %130 : vector<3x256xf32>
    %132 = tpu.concatenate %99, %103, %107, %111, %115, %119, %123, %127, %131 in 0 : vector<3x256xf32>, vector<3x256xf32>, vector<3x256xf32>, vector<3x256xf32>, vector<3x256xf32>, vector<3x256xf32>, vector<3x256xf32>, vector<3x256xf32>, vector<3x256xf32> -> vector<27x256xf32>
    %cst_16 = arith.constant dense<0.000000e+00> : vector<6x256xf32>
    %133 = tpu.matmul %2, %132, %cst_16 {dimension_numbers = #tpu.dot_dimension_numbers<[1], [0], [0], [1], [0, 0, 1, 1], [], []>} : vector<6x27xf32>, vector<27x256xf32>, vector<6x256xf32> -> vector<6x256xf32>
    %134 = vector.broadcast %3 : vector<6x1xf32> to vector<6x256xf32>
    %135 = arith.addf %133, %134 : vector<6x256xf32>
    %cst_17 = arith.constant 0.000000e+00 : f32
    %136 = vector.broadcast %cst_17 : f32 to vector<6x256xf32>
    %137 = arith.maximumf %135, %136 : vector<6x256xf32>
    %cst_18 = arith.constant 0.000000e+00 : f32
    %138 = vector.broadcast %cst_18 : f32 to vector<6x128xf32>
    %139 = tpu.concatenate %138, %137, %138 in 1 : vector<6x128xf32>, vector<6x256xf32>, vector<6x128xf32> -> vector<6x512xf32>
    %140 = vector.extract_strided_slice %139 {offsets = [0, 111], sizes = [6, 256], strides = [1, 1]} : vector<6x512xf32> to vector<6x256xf32>
    %141 = vector.extract_strided_slice %0 {offsets = [0, 0], sizes = [1, 256], strides = [1, 1]} : vector<9x256xf32> to vector<1x256xf32>
    %142 = vector.broadcast %141 : vector<1x256xf32> to vector<6x256xf32>
    %143 = arith.mulf %140, %142 : vector<6x256xf32>
    %144 = vector.extract_strided_slice %139 {offsets = [0, 112], sizes = [6, 256], strides = [1, 1]} : vector<6x512xf32> to vector<6x256xf32>
    %145 = vector.extract_strided_slice %0 {offsets = [1, 0], sizes = [1, 256], strides = [1, 1]} : vector<9x256xf32> to vector<1x256xf32>
    %146 = vector.broadcast %145 : vector<1x256xf32> to vector<6x256xf32>
    %147 = arith.mulf %144, %146 : vector<6x256xf32>
    %148 = vector.extract_strided_slice %139 {offsets = [0, 113], sizes = [6, 256], strides = [1, 1]} : vector<6x512xf32> to vector<6x256xf32>
    %149 = vector.extract_strided_slice %0 {offsets = [2, 0], sizes = [1, 256], strides = [1, 1]} : vector<9x256xf32> to vector<1x256xf32>
    %150 = vector.broadcast %149 : vector<1x256xf32> to vector<6x256xf32>
    %151 = arith.mulf %148, %150 : vector<6x256xf32>
    %152 = vector.extract_strided_slice %139 {offsets = [0, 127], sizes = [6, 256], strides = [1, 1]} : vector<6x512xf32> to vector<6x256xf32>
    %153 = vector.extract_strided_slice %0 {offsets = [3, 0], sizes = [1, 256], strides = [1, 1]} : vector<9x256xf32> to vector<1x256xf32>
    %154 = vector.broadcast %153 : vector<1x256xf32> to vector<6x256xf32>
    %155 = arith.mulf %152, %154 : vector<6x256xf32>
    %156 = vector.extract_strided_slice %139 {offsets = [0, 128], sizes = [6, 256], strides = [1, 1]} : vector<6x512xf32> to vector<6x256xf32>
    %157 = vector.extract_strided_slice %0 {offsets = [4, 0], sizes = [1, 256], strides = [1, 1]} : vector<9x256xf32> to vector<1x256xf32>
    %158 = vector.broadcast %157 : vector<1x256xf32> to vector<6x256xf32>
    %159 = arith.mulf %156, %158 : vector<6x256xf32>
    %160 = vector.extract_strided_slice %139 {offsets = [0, 129], sizes = [6, 256], strides = [1, 1]} : vector<6x512xf32> to vector<6x256xf32>
    %161 = vector.extract_strided_slice %0 {offsets = [5, 0], sizes = [1, 256], strides = [1, 1]} : vector<9x256xf32> to vector<1x256xf32>
    %162 = vector.broadcast %161 : vector<1x256xf32> to vector<6x256xf32>
    %163 = arith.mulf %160, %162 : vector<6x256xf32>
    %164 = vector.extract_strided_slice %139 {offsets = [0, 143], sizes = [6, 256], strides = [1, 1]} : vector<6x512xf32> to vector<6x256xf32>
    %165 = vector.extract_strided_slice %0 {offsets = [6, 0], sizes = [1, 256], strides = [1, 1]} : vector<9x256xf32> to vector<1x256xf32>
    %166 = vector.broadcast %165 : vector<1x256xf32> to vector<6x256xf32>
    %167 = arith.mulf %164, %166 : vector<6x256xf32>
    %168 = vector.extract_strided_slice %139 {offsets = [0, 144], sizes = [6, 256], strides = [1, 1]} : vector<6x512xf32> to vector<6x256xf32>
    %169 = vector.extract_strided_slice %0 {offsets = [7, 0], sizes = [1, 256], strides = [1, 1]} : vector<9x256xf32> to vector<1x256xf32>
    %170 = vector.broadcast %169 : vector<1x256xf32> to vector<6x256xf32>
    %171 = arith.mulf %168, %170 : vector<6x256xf32>
    %172 = vector.extract_strided_slice %139 {offsets = [0, 145], sizes = [6, 256], strides = [1, 1]} : vector<6x512xf32> to vector<6x256xf32>
    %173 = vector.extract_strided_slice %0 {offsets = [8, 0], sizes = [1, 256], strides = [1, 1]} : vector<9x256xf32> to vector<1x256xf32>
    %174 = vector.broadcast %173 : vector<1x256xf32> to vector<6x256xf32>
    %175 = arith.mulf %172, %174 : vector<6x256xf32>
    %176 = tpu.concatenate %143, %147, %151, %155, %159, %163, %167, %171, %175 in 0 : vector<6x256xf32>, vector<6x256xf32>, vector<6x256xf32>, vector<6x256xf32>, vector<6x256xf32>, vector<6x256xf32>, vector<6x256xf32>, vector<6x256xf32>, vector<6x256xf32> -> vector<54x256xf32>
    %cst_19 = arith.constant dense<0.000000e+00> : vector<6x256xf32>
    %177 = tpu.matmul %4, %176, %cst_19 {dimension_numbers = #tpu.dot_dimension_numbers<[1], [0], [0], [1], [0, 0, 1, 1], [], []>} : vector<6x54xf32>, vector<54x256xf32>, vector<6x256xf32> -> vector<6x256xf32>
    %178 = vector.broadcast %5 : vector<6x1xf32> to vector<6x256xf32>
    %179 = arith.addf %177, %178 : vector<6x256xf32>
    %180 = tpu.concatenate %92, %179 in 0 : vector<6x256xf32>, vector<6x256xf32> -> vector<12x256xf32>
    %c0_20 = arith.constant 0 : index
    %c0_21 = arith.constant 0 : index
    %181 = vector.load %arg6[%c0_20, %c0_21] : memref<12x256xf32, #tpu.memory_space<vmem>>, vector<12x256xf32>
    tpu.vector_store %arg6[%c0_20, %c0_21], %180 {strides = array<i32>} : memref<12x256xf32, #tpu.memory_space<vmem>>, vector<12x256xf32>,
    return
  }
}

</mosaic_0001>

<llo_original>
// kernel: simple_conv_model.1
$region0: #{simple_conv_model.1}
  #allocation0 [shape = 'u32[]', space=smem, size = 0x4, offset = 0x4, fixed_abs, tag = 'smem constant byte address 0x4 - core index']
  #allocation1 [shape = 'u32[144,128]{1,0:T(1,128)}', space=vmem, size = 0x12000, scoped, tag = 'internal scratch']
  %s0 = inlined_call_operand.vmem [shape: f32[6,256], index: 0, kind: input, shape index: {}]
  %s1 = inlined_call_operand.vmem [shape: f32[9,256], index: 1, kind: input, shape index: {}]
  %s2 = inlined_call_operand.vmem [shape: f32[6,27], index: 2, kind: input, shape index: {}]
  %s3 = inlined_call_operand.vmem [shape: f32[6,1], index: 3, kind: input, shape index: {}]
  %s4 = inlined_call_operand.vmem [shape: f32[6,54], index: 4, kind: input, shape index: {}]
  %s5 = inlined_call_operand.vmem [shape: f32[6,1], index: 5, kind: input, shape index: {}]
  %s6 = inlined_call_operand.vmem [shape: f32[12,256], index: 6, kind: output, shape index: {}]
  %s7 = sld [smem:[#allocation0]]
  $region34: #{simple_conv_model.1} parent=0
    _
  %s9 = ssub.s32 1, %s7
  %s10 = scalar_select 0, %s9, %s7
  // Predicated region
  $region2: #{simple_conv_model.1} parent=0 // pred_check
    _
  $region3: #{simple_conv_model.1} parent=0 // pred_check_branch
    %12 = sbr.rel (0) target = $region5
  $region4: #{simple_conv_model.1} parent=0 // pred_region
    _
  $region5: #{simple_conv_model.1} parent=0 // pred_fallthru
    _
  // Predicated region
  $region6: #{simple_conv_model.1} parent=0 // pred_check
    _
  $region7: #{simple_conv_model.1} parent=0 // pred_check_branch
    %14 = sbr.rel (0) target = $region9
  $region8: #{simple_conv_model.1} parent=0 // pred_region
    _
  $region9: #{simple_conv_model.1} parent=0 // pred_fallthru
    _
  // Predicated region
  $region10: #{simple_conv_model.1} parent=0 // pred_check
    _
  $region11: #{simple_conv_model.1} parent=0 // pred_check_branch
    %16 = sbr.rel (0) target = $region13
  $region12: #{simple_conv_model.1} parent=0 // pred_region
    _
  $region13: #{simple_conv_model.1} parent=0 // pred_fallthru
    _
  // Predicated region
  $region14: #{simple_conv_model.1} parent=0 // pred_check
    _
  $region15: #{simple_conv_model.1} parent=0 // pred_check_branch
    %18 = sbr.rel (0) target = $region17
  $region16: #{simple_conv_model.1} parent=0 // pred_region
    _
  $region17: #{simple_conv_model.1} parent=0 // pred_fallthru
    _
  // Predicated region
  $region18: #{simple_conv_model.1} parent=0 // pred_check
    _
  $region19: #{simple_conv_model.1} parent=0 // pred_check_branch
    %20 = sbr.rel (0) target = $region21
  $region20: #{simple_conv_model.1} parent=0 // pred_region
    _
  $region21: #{simple_conv_model.1} parent=0 // pred_fallthru
    _
  // Predicated region
  $region22: #{simple_conv_model.1} parent=0 // pred_check
    _
  $region23: #{simple_conv_model.1} parent=0 // pred_check_branch
    %22 = sbr.rel (0) target = $region25
  $region24: #{simple_conv_model.1} parent=0 // pred_region
    _
  $region25: #{simple_conv_model.1} parent=0 // pred_fallthru
    _
  %v23 = vld [vmem:[%s1] sm:$0xff]
  %v24 = vld [vmem:[%s1 + $0x8] sm:$0xff]
  %v25 = vld [vmem:[%s1 + $0x10] sm:$0x1]
  %v26 = vld [vmem:[%s1 + $0x18] sm:$0x1]
  %v27 = vld [vmem:[%s0] sm:$0x3f]
  %v28 = vld [vmem:[%s0 + $0x8] sm:$0x3f]
  %v29 = vld [vmem:[%s2] sm:$0x3f]
  %v30 = vld [vmem:[%s3] sm:$0x3f]
  %v31 = vld [vmem:[%s4] sm:$0x3f]
  %v32 = vld [vmem:[%s5] sm:$0x3f]
  %v33 = vlaneseq
  %v34 = vshrl.u32 %v33, 7
  %v35 = vsub.s32 0, %v34
  %v36 = vrot.slane %v23, %v35
  %v37 = vlaneseq
  %v38 = vshrl.u32 %v37, 7
  %v39 = vsub.s32 0, %v38
  %v40 = vrot.slane %v24, %v39
  %43 = vrot.lane.b32.xlu0 %v36, 111
  %v44 = vpop.permute.xlu0 %43
  %45 = vrot.lane.b32.xlu0 %v40, 111
  %v46 = vpop.permute.xlu0 %45
  %vm47 = vcmask 908288
  %v48 = vsel %vm47, %v44, %v46
  %v52 = vmul.f32 %v44, 0.0
  %v53 = vmul.f32 %v27, %v48
  %v54 = vmul.f32 %v28, %v46
  %v55 = vlaneseq
  %v56 = vshrl.u32 %v55, 7
  %v57 = vsub.s32 1, %v56
  %v58 = vrot.slane %v23, %v57
  %v59 = vlaneseq
  %v60 = vshrl.u32 %v59, 7
  %v61 = vsub.s32 1, %v60
  %v62 = vrot.slane %v24, %v61
  %65 = vrot.lane.b32.xlu0 %v58, 112
  %v66 = vpop.permute.xlu0 %65
  %67 = vrot.lane.b32.xlu0 %v62, 112
  %v68 = vpop.permute.xlu0 %67
  %vm69 = vcmask 916480
  %v70 = vsel %vm69, %v66, %v68
  %v74 = vmul.f32 %v66, 0.0
  %v75 = vmul.f32 %v27, %v70
  %v76 = vmul.f32 %v28, %v68
  %v77 = vlaneseq
  %v78 = vshrl.u32 %v77, 7
  %v79 = vsub.s32 2, %v78
  %v80 = vrot.slane %v23, %v79
  %v81 = vlaneseq
  %v82 = vshrl.u32 %v81, 7
  %v83 = vsub.s32 2, %v82
  %v84 = vrot.slane %v24, %v83
  %87 = vrot.lane.b32.xlu0 %v80, 113
  %v88 = vpop.permute.xlu0 %87
  %89 = vrot.lane.b32.xlu0 %v84, 113
  %v90 = vpop.permute.xlu0 %89
  %vm91 = vcmask 924672
  %v92 = vsel %vm91, %v88, %v90
  %v96 = vmul.f32 %v88, 0.0
  %v97 = vmul.f32 %v27, %v92
  %v98 = vmul.f32 %v28, %v90
  %v99 = vlaneseq
  %v100 = vshrl.u32 %v99, 7
  %v101 = vsub.s32 3, %v100
  %v102 = vrot.slane %v23, %v101
  %v103 = vlaneseq
  %v104 = vshrl.u32 %v103, 7
  %v105 = vsub.s32 3, %v104
  %v106 = vrot.slane %v24, %v105
  %109 = vrot.lane.b32.xlu0 %v102, 127
  %v110 = vpop.permute.xlu0 %109
  %111 = vrot.lane.b32.xlu0 %v106, 127
  %v112 = vpop.permute.xlu0 %111
  %vm113 = vcmask 1039360
  %v114 = vsel %vm113, %v110, %v112
  %v118 = vmul.f32 %v110, 0.0
  %v119 = vmul.f32 %v27, %v114
  %v120 = vmul.f32 %v28, %v112
  %v121 = vlaneseq
  %v122 = vshrl.u32 %v121, 7
  %v123 = vsub.s32 4, %v122
  %v124 = vrot.slane %v23, %v123
  %v125 = vlaneseq
  %v126 = vshrl.u32 %v125, 7
  %v127 = vsub.s32 4, %v126
  %v128 = vrot.slane %v24, %v127
  %v129 = vmul.f32 %v27, %v124
  %v130 = vmul.f32 %v28, %v128
  %v131 = vlaneseq
  %v132 = vshrl.u32 %v131, 7
  %v133 = vsub.s32 5, %v132
  %v134 = vrot.slane %v23, %v133
  %v135 = vlaneseq
  %v136 = vshrl.u32 %v135, 7
  %v137 = vsub.s32 5, %v136
  %v138 = vrot.slane %v24, %v137
  %141 = vrot.lane.b32.xlu0 %v134, 1
  %v142 = vpop.permute.xlu0 %141
  %143 = vrot.lane.b32.xlu0 %v138, 1
  %v144 = vpop.permute.xlu0 %143
  %vm145 = vcmask 7168
  %v146 = vsel %vm145, %v142, %v144
  %v150 = vmul.f32 %v27, %v142
  %v151 = vmul.f32 %v28, %v146
  %v152 = vmul.f32 %v144, 0.0
  %v153 = vlaneseq
  %v154 = vshrl.u32 %v153, 7
  %v155 = vsub.s32 6, %v154
  %v156 = vrot.slane %v23, %v155
  %v157 = vlaneseq
  %v158 = vshrl.u32 %v157, 7
  %v159 = vsub.s32 6, %v158
  %v160 = vrot.slane %v24, %v159
  %163 = vrot.lane.b32.xlu0 %v156, 15
  %v164 = vpop.permute.xlu0 %163
  %165 = vrot.lane.b32.xlu0 %v160, 15
  %v166 = vpop.permute.xlu0 %165
  %vm167 = vcmask 121856
  %v168 = vsel %vm167, %v164, %v166
  %v172 = vmul.f32 %v27, %v164
  %v173 = vmul.f32 %v28, %v168
  %v174 = vmul.f32 %v166, 0.0
  %v175 = vlaneseq
  %v176 = vshrl.u32 %v175, 7
  %v177 = vsub.s32 7, %v176
  %v178 = vrot.slane %v23, %v177
  %v179 = vlaneseq
  %v180 = vshrl.u32 %v179, 7
  %v181 = vsub.s32 7, %v180
  %v182 = vrot.slane %v24, %v181
  %185 = vrot.lane.b32.xlu0 %v178, 16
  %v186 = vpop.permute.xlu0 %185
  %187 = vrot.lane.b32.xlu0 %v182, 16
  %v188 = vpop.permute.xlu0 %187
  %vm189 = vcmask 130048
  %v190 = vsel %vm189, %v186, %v188
  %v194 = vmul.f32 %v27, %v186
  %v195 = vmul.f32 %v28, %v190
  %v196 = vmul.f32 %v188, 0.0
  %v197 = vlaneseq
  %v198 = vshrl.u32 %v197, 7
  %v199 = vsub.s32 0, %v198
  %v200 = vrot.slane %v25, %v199
  %v201 = vlaneseq
  %v202 = vshrl.u32 %v201, 7
  %v203 = vsub.s32 0, %v202
  %v204 = vrot.slane %v26, %v203
  %207 = vrot.lane.b32.xlu0 %v200, 17
  %v208 = vpop.permute.xlu0 %207
  %209 = vrot.lane.b32.xlu0 %v204, 17
  %v210 = vpop.permute.xlu0 %209
  %vm211 = vcmask 138240
  %v212 = vsel %vm211, %v208, %v210
  %v216 = vmul.f32 %v27, %v208
  %v217 = vmul.f32 %v28, %v212
  %v218 = vmul.f32 %v210, 0.0
  %v222 = vrot.slane %v74, 5
  %v223 = vrot.slane %v75, 5
  %v224 = vrot.slane %v76, 5
  %225 = vrot.lane.b32.xlu0 %v222, 127
  %v226 = vpop.permute.xlu0 %225
  %227 = vrot.lane.b32.xlu0 %v223, 127
  %v228 = vpop.permute.xlu0 %227
  %229 = vrot.lane.b32.xlu0 %v224, 127
  %v230 = vpop.permute.xlu0 %229
  %v231 = vsel %vm113, %v226, %v228
  %v232 = vsel %vm113, %v228, %v230
  %v239 = vrot.slane %v96, 2
  %v240 = vrot.slane %v97, 2
  %v241 = vrot.slane %v98, 2
  %242 = vrot.lane.b32.xlu0 %v239, 126
  %v243 = vpop.permute.xlu0 %242
  %244 = vrot.lane.b32.xlu0 %v240, 126
  %v245 = vpop.permute.xlu0 %244
  %246 = vrot.lane.b32.xlu0 %v241, 126
  %v247 = vpop.permute.xlu0 %246
  %vm248 = vcmask 1031168
  %v249 = vsel %vm248, %v243, %v245
  %v250 = vsel %vm248, %v245, %v247
  %v257 = vrot.slane %v118, 7
  %v258 = vrot.slane %v119, 7
  %v259 = vrot.slane %v120, 7
  %260 = vrot.lane.b32.xlu0 %v257, 112
  %v261 = vpop.permute.xlu0 %260
  %262 = vrot.lane.b32.xlu0 %v258, 112
  %v263 = vpop.permute.xlu0 %262
  %264 = vrot.lane.b32.xlu0 %v259, 112
  %v265 = vpop.permute.xlu0 %264
  %v266 = vsel %vm69, %v261, %v263
  %v267 = vsel %vm69, %v263, %v265
  %v273 = vrot.slane %v129, 4
  %v274 = vrot.slane %v130, 4
  %275 = vrot.lane.b32.xlu0 %v273, 111
  %v276 = vpop.permute.xlu0 %275
  %277 = vrot.lane.b32.xlu0 %v274, 111
  %v278 = vpop.permute.xlu0 %277
  %v279 = vsel %vm47, %v276, %v278
  %v286 = vrot.slane %v150, 1
  %v287 = vrot.slane %v151, 1
  %v288 = vrot.slane %v152, 1
  %289 = vrot.lane.b32.xlu0 %v286, 110
  %v290 = vpop.permute.xlu0 %289
  %291 = vrot.lane.b32.xlu0 %v287, 110
  %v292 = vpop.permute.xlu0 %291
  %293 = vrot.lane.b32.xlu0 %v288, 110
  %v294 = vpop.permute.xlu0 %293
  %vm295 = vcmask 900096
  %v296 = vsel %vm295, %v290, %v292
  %v297 = vsel %vm295, %v292, %v294
  %v304 = vrot.slane %v172, 6
  %v305 = vrot.slane %v173, 6
  %v306 = vrot.slane %v174, 6
  %307 = vrot.lane.b32.xlu0 %v304, 96
  %v308 = vpop.permute.xlu0 %307
  %309 = vrot.lane.b32.xlu0 %v305, 96
  %v310 = vpop.permute.xlu0 %309
  %311 = vrot.lane.b32.xlu0 %v306, 96
  %v312 = vpop.permute.xlu0 %311
  %vm313 = vcmask 785408
  %v314 = vsel %vm313, %v308, %v310
  %v315 = vsel %vm313, %v310, %v312
  %v322 = vrot.slane %v194, 3
  %v323 = vrot.slane %v195, 3
  %v324 = vrot.slane %v196, 3
  %325 = vrot.lane.b32.xlu0 %v322, 95
  %v326 = vpop.permute.xlu0 %325
  %327 = vrot.lane.b32.xlu0 %v323, 95
  %v328 = vpop.permute.xlu0 %327
  %329 = vrot.lane.b32.xlu0 %v324, 95
  %v330 = vpop.permute.xlu0 %329
  %vm331 = vcmask 777216
  %v332 = vsel %vm331, %v326, %v328
  %v333 = vsel %vm331, %v328, %v330
  %340 = vrot.lane.b32.xlu0 %v216, 94
  %v341 = vpop.permute.xlu0 %340
  %342 = vrot.lane.b32.xlu0 %v217, 94
  %v343 = vpop.permute.xlu0 %342
  %344 = vrot.lane.b32.xlu0 %v218, 94
  %v345 = vpop.permute.xlu0 %344
  %vm346 = vcmask 769024
  %v347 = vsel %vm346, %v341, %v343
  %v348 = vsel %vm346, %v343, %v345
  %vm349 = vcmask 1042432
  %v350 = vsel %vm349, %v52, %v231
  %v351 = vsel %vm349, %v53, %v232
  %v352 = vsel %vm349, %v54, %v230
  %vm353 = vcmask 1045504
  %v354 = vsel %vm353, %v350, %v249
  %v355 = vsel %vm353, %v351, %v250
  %v356 = vsel %vm353, %v352, %v247
  %vm357 = vcmask 1040384
  %v358 = vsel %vm357, %v249, %v266
  %v359 = vsel %vm357, %v250, %v267
  %v360 = vsel %vm357, %v247, %v265
  %vm361 = vcmask 1043456
  %v362 = vsel %vm361, %v358, %v276
  %v363 = vsel %vm361, %v359, %v279
  %v364 = vsel %vm361, %v360, %v278
  %vm365 = vcmask 1046528
  %v366 = vsel %vm365, %v362, %v290
  %v367 = vsel %vm365, %v363, %v296
  %v368 = vsel %vm365, %v364, %v297
  %vm369 = vcmask 1041408
  %v370 = vsel %vm369, %v290, %v308
  %v371 = vsel %vm369, %v296, %v314
  %v372 = vsel %vm369, %v297, %v315
  %vm373 = vcmask 1044480
  %v374 = vsel %vm373, %v370, %v326
  %v375 = vsel %vm373, %v371, %v332
  %v376 = vsel %vm373, %v372, %v333
  %378 = vset.pattern.permute.xlu0 0
  %379 = vperm.xlu0 %378, %v30
  %v380 = vpop.permute.xlu0 %379
  %391 = vrot.lane.b32.xlu0 %v354, 17
  %v392 = vpop.permute.xlu0 %391
  %393 = vrot.lane.b32.xlu0 %v355, 17
  %v394 = vpop.permute.xlu0 %393
  %395 = vrot.lane.b32.xlu0 %v356, 17
  %v396 = vpop.permute.xlu0 %395
  %397 = vrot.lane.b32.xlu0 %v366, 17
  %v398 = vpop.permute.xlu0 %397
  %399 = vrot.lane.b32.xlu0 %v367, 17
  %v400 = vpop.permute.xlu0 %399
  %401 = vrot.lane.b32.xlu0 %v368, 17
  %v402 = vpop.permute.xlu0 %401
  %403 = vrot.lane.b32.xlu0 %v374, 17
  %v404 = vpop.permute.xlu0 %403
  %405 = vrot.lane.b32.xlu0 %v375, 17
  %v406 = vpop.permute.xlu0 %405
  %407 = vrot.lane.b32.xlu0 %v376, 17
  %v408 = vpop.permute.xlu0 %407
  %409 = vrot.lane.b32.xlu0 %v341, 17
  %v410 = vpop.permute.xlu0 %409
  %411 = vrot.lane.b32.xlu0 %v347, 17
  %v412 = vpop.permute.xlu0 %411
  %413 = vrot.lane.b32.xlu0 %v348, 17
  %v414 = vpop.permute.xlu0 %413
  %v415 = vsel %vm211, %v392, %v394
  %v416 = vsel %vm211, %v394, %v396
  %v417 = vsel %vm211, %v398, %v400
  %v418 = vsel %vm211, %v400, %v402
  %v419 = vsel %vm211, %v404, %v406
  %v420 = vsel %vm211, %v406, %v408
  %v421 = vsel %vm211, %v410, %v412
  %v422 = vsel %vm211, %v412, %v414
  %vm429 = vcmask 220160
  %v431 = vsel %vm429, %v29, 0
  %v433 = vsel %vm349, %v421, 0
  %v435 = vsel %vm349, %v422, 0
  %437 = vmatprep.subr.mxu0 %v416
  %438 = vmatpush1.msra.mxu0 %v415
  %439 = vmatprep.subr.mxu0 %v418
  %440 = vmatpush1.msra.mxu0 %v417
  %441 = vmatprep.subr.mxu0 %v420
  %442 = vmatpush1.msra.mxu0 %v419
  %443 = vmatprep.subr.mxu0 %v435
  %444 = vmatpush1.msra.mxu0 %v433
  %445 = vmatprep.subr.mxu0 0.0
  %446 = vmatpush1.msra.mxu0 0.0
  %447 = vmatprep.subr.mxu0 0.0
  %448 = vmatpush1.msra.mxu0 0.0
  %449 = vmatprep.subr.mxu0 0.0
  %450 = vmatpush1.msra.mxu0 0.0
  %451 = vmatprep.subr.mxu0 0.0
  %452 = vmatpush1.msra.mxu0 0.0
  %453 = vmatprep.subr.mxu0 0.0
  %454 = vmatpush1.msra.mxu0 0.0
  %455 = vmatprep.subr.mxu0 0.0
  %456 = vmatpush1.msra.mxu0 0.0
  %457 = vmatprep.subr.mxu0 0.0
  %458 = vmatpush1.msra.mxu0 0.0
  %459 = vmatprep.subr.mxu0 0.0
  %460 = vmatpush1.msra.mxu0 0.0
  %461 = vmatprep.subr.mxu0 0.0
  %462 = vmatpush1.msra.mxu0 0.0
  %463 = vmatprep.subr.mxu0 0.0
  %464 = vmatpush1.msra.mxu0 0.0
  %465 = vmatprep.subr.mxu0 0.0
  %466 = vmatpush1.msra.mxu0 0.0
  %467 = vmatprep.subr.mxu0 0.0
  %468 = vmatpush1.msra.mxu0 0.0
  %469 = vmatprep.subr.mxu0 0.0
  %470 = vmatpush1.msra.mxu0 0.0
  %471 = vmatprep.subr.mxu0 0.0
  %472 = vmatpush1.msra.mxu0 0.0
  %473 = vmatprep.subr.mxu0 0.0
  %474 = vmatpush1.msra.mxu0 0.0
  %475 = vmatprep.subr.mxu0 0.0
  %476 = vmatpush1.msra.mxu0 0.0
  %477 = vmatprep.subr.mxu0 0.0
  %478 = vmatpush1.msra.mxu0 0.0
  %479 = vmatprep.subr.mxu0 0.0
  %480 = vmatpush1.msra.mxu0 0.0
  %481 = vmatprep.subr.mxu0 0.0
  %482 = vmatpush1.msra.mxu0 0.0
  %483 = vmatprep.subr.mxu0 0.0
  %484 = vmatpush1.msra.mxu0 0.0
  %485 = vmatprep.subr.mxu0 0.0
  %486 = vmatpush1.msra.mxu0 0.0
  %487 = vmatprep.subr.mxu0 0.0
  %488 = vmatpush1.msra.mxu0 0.0
  %489 = vmatprep.subr.mxu0 0.0
  %490 = vmatpush1.msra.mxu0 0.0
  %491 = vmatprep.subr.mxu0 0.0
  %492 = vmatpush1.msra.mxu0 0.0
  %493 = vmatprep.subr.mxu0 0.0
  %494 = vmatpush1.msra.mxu0 0.0
  %495 = vmatprep.subr.mxu0 0.0
  %496 = vmatpush1.msra.mxu0 0.0
  %497 = vmatprep.subr.mxu0 0.0
  %498 = vmatpush1.msra.mxu0 0.0
  %499 = vmatprep.subr.mxu0 0.0
  %500 = vmatpush1.msra.mxu0 0.0
  %501 = vmatprep.mubr.f32.mxu0 0.0
  %502 = vmatmul.mubr.f32.gmra.mrb[0].mxu0 %v431
  %v503 = vpop.f32.mrb[0].mxu0
  %v504 = vadd.f32 %v380, %v503
  %v505 = vpop.f32.mrb[0].mxu0
  %v506 = vadd.f32 %v380, %v505
  %507 = vdwg.mxu0
  %v508 = vmax.f32 %v504, 0.0
  %v509 = vmax.f32 %v506, 0.0
  %v510 = vmul.f32 %v508, %v48
  %v511 = vmul.f32 %v509, %v46
  %v512 = vmul.f32 %v508, %v70
  %v513 = vmul.f32 %v509, %v68
  %v514 = vmul.f32 %v508, %v92
  %v515 = vmul.f32 %v509, %v90
  %v516 = vmul.f32 %v508, %v114
  %v517 = vmul.f32 %v509, %v112
  %v518 = vmul.f32 %v508, %v124
  %v519 = vmul.f32 %v509, %v128
  %v520 = vmul.f32 %v508, %v142
  %v521 = vmul.f32 %v509, %v146
  %v522 = vmul.f32 %v508, %v164
  %v523 = vmul.f32 %v509, %v168
  %v524 = vmul.f32 %v508, %v186
  %v525 = vmul.f32 %v509, %v190
  %v526 = vmul.f32 %v508, %v208
  %v527 = vmul.f32 %v509, %v212
  %v530 = vrot.slane %v74, 2
  %v531 = vrot.slane %v512, 2
  %v532 = vrot.slane %v513, 2
  %533 = vrot.lane.b32.xlu0 %v530, 127
  %v534 = vpop.permute.xlu0 %533
  %535 = vrot.lane.b32.xlu0 %v531, 127
  %v536 = vpop.permute.xlu0 %535
  %537 = vrot.lane.b32.xlu0 %v532, 127
  %v538 = vpop.permute.xlu0 %537
  %v539 = vsel %vm113, %v534, %v536
  %v540 = vsel %vm113, %v536, %v538
  %v546 = vrot.slane %v96, 4
  %v547 = vrot.slane %v514, 4
  %v548 = vrot.slane %v515, 4
  %549 = vrot.lane.b32.xlu0 %v546, 126
  %v550 = vpop.permute.xlu0 %549
  %551 = vrot.lane.b32.xlu0 %v547, 126
  %v552 = vpop.permute.xlu0 %551
  %553 = vrot.lane.b32.xlu0 %v548, 126
  %v554 = vpop.permute.xlu0 %553
  %v555 = vsel %vm248, %v550, %v552
  %v556 = vsel %vm248, %v552, %v554
  %v562 = vrot.slane %v118, 6
  %v563 = vrot.slane %v516, 6
  %v564 = vrot.slane %v517, 6
  %565 = vrot.lane.b32.xlu0 %v562, 112
  %v566 = vpop.permute.xlu0 %565
  %567 = vrot.lane.b32.xlu0 %v563, 112
  %v568 = vpop.permute.xlu0 %567
  %569 = vrot.lane.b32.xlu0 %v564, 112
  %v570 = vpop.permute.xlu0 %569
  %v571 = vsel %vm69, %v566, %v568
  %v572 = vsel %vm69, %v568, %v570
  %578 = vrot.lane.b32.xlu0 %v518, 111
  %v579 = vpop.permute.xlu0 %578
  %580 = vrot.lane.b32.xlu0 %v519, 111
  %v581 = vpop.permute.xlu0 %580
  %v582 = vsel %vm47, %v579, %v581
  %v588 = vrot.slane %v520, 2
  %v589 = vrot.slane %v521, 2
  %v590 = vrot.slane %v152, 2
  %591 = vrot.lane.b32.xlu0 %v588, 110
  %v592 = vpop.permute.xlu0 %591
  %593 = vrot.lane.b32.xlu0 %v589, 110
  %v594 = vpop.permute.xlu0 %593
  %595 = vrot.lane.b32.xlu0 %v590, 110
  %v596 = vpop.permute.xlu0 %595
  %v597 = vsel %vm295, %v592, %v594
  %v598 = vsel %vm295, %v594, %v596
  %v604 = vrot.slane %v522, 4
  %v605 = vrot.slane %v523, 4
  %v606 = vrot.slane %v174, 4
  %607 = vrot.lane.b32.xlu0 %v604, 96
  %v608 = vpop.permute.xlu0 %607
  %609 = vrot.lane.b32.xlu0 %v605, 96
  %v610 = vpop.permute.xlu0 %609
  %611 = vrot.lane.b32.xlu0 %v606, 96
  %v612 = vpop.permute.xlu0 %611
  %v613 = vsel %vm313, %v608, %v610
  %v614 = vsel %vm313, %v610, %v612
  %v620 = vrot.slane %v524, 6
  %v621 = vrot.slane %v525, 6
  %v622 = vrot.slane %v196, 6
  %623 = vrot.lane.b32.xlu0 %v620, 95
  %v624 = vpop.permute.xlu0 %623
  %625 = vrot.lane.b32.xlu0 %v621, 95
  %v626 = vpop.permute.xlu0 %625
  %627 = vrot.lane.b32.xlu0 %v622, 95
  %v628 = vpop.permute.xlu0 %627
  %v629 = vsel %vm331, %v624, %v626
  %v630 = vsel %vm331, %v626, %v628
  %636 = vrot.lane.b32.xlu0 %v526, 94
  %v637 = vpop.permute.xlu0 %636
  %638 = vrot.lane.b32.xlu0 %v527, 94
  %v639 = vpop.permute.xlu0 %638
  %v640 = vsel %vm346, %v637, %v639
  %v641 = vsel %vm346, %v639, %v345
  %v642 = vsel %vm353, %v52, %v539
  %v643 = vsel %vm353, %v510, %v540
  %v644 = vsel %vm353, %v511, %v538
  %v645 = vsel %vm361, %v539, %v555
  %v646 = vsel %vm361, %v540, %v556
  %v647 = vsel %vm361, %v538, %v554
  %v648 = vsel %vm369, %v555, %v571
  %v649 = vsel %vm369, %v556, %v572
  %v650 = vsel %vm369, %v554, %v570
  %v651 = vsel %vm353, %v579, %v592
  %v652 = vsel %vm353, %v582, %v597
  %v653 = vsel %vm353, %v581, %v598
  %v654 = vsel %vm361, %v592, %v608
  %v655 = vsel %vm361, %v597, %v613
  %v656 = vsel %vm361, %v598, %v614
  %v657 = vsel %vm369, %v608, %v624
  %v658 = vsel %vm369, %v613, %v629
  %v659 = vsel %vm369, %v614, %v630
  %661 = vset.pattern.permute.xlu0 0
  %662 = vperm.xlu0 %661, %v32
  %v663 = vpop.permute.xlu0 %662
  %683 = vrot.lane.b32.xlu0 %v642, 17
  %v684 = vpop.permute.xlu0 %683
  %685 = vrot.lane.b32.xlu0 %v643, 17
  %v686 = vpop.permute.xlu0 %685
  %687 = vrot.lane.b32.xlu0 %v644, 17
  %v688 = vpop.permute.xlu0 %687
  %689 = vrot.lane.b32.xlu0 %v645, 17
  %v690 = vpop.permute.xlu0 %689
  %691 = vrot.lane.b32.xlu0 %v646, 17
  %v692 = vpop.permute.xlu0 %691
  %693 = vrot.lane.b32.xlu0 %v647, 17
  %v694 = vpop.permute.xlu0 %693
  %695 = vrot.lane.b32.xlu0 %v648, 17
  %v696 = vpop.permute.xlu0 %695
  %697 = vrot.lane.b32.xlu0 %v649, 17
  %v698 = vpop.permute.xlu0 %697
  %699 = vrot.lane.b32.xlu0 %v650, 17
  %v700 = vpop.permute.xlu0 %699
  %701 = vrot.lane.b32.xlu0 %v651, 17
  %v702 = vpop.permute.xlu0 %701
  %703 = vrot.lane.b32.xlu0 %v652, 17
  %v704 = vpop.permute.xlu0 %703
  %705 = vrot.lane.b32.xlu0 %v653, 17
  %v706 = vpop.permute.xlu0 %705
  %707 = vrot.lane.b32.xlu0 %v654, 17
  %v708 = vpop.permute.xlu0 %707
  %709 = vrot.lane.b32.xlu0 %v655, 17
  %v710 = vpop.permute.xlu0 %709
  %711 = vrot.lane.b32.xlu0 %v656, 17
  %v712 = vpop.permute.xlu0 %711
  %713 = vrot.lane.b32.xlu0 %v657, 17
  %v714 = vpop.permute.xlu0 %713
  %715 = vrot.lane.b32.xlu0 %v658, 17
  %v716 = vpop.permute.xlu0 %715
  %717 = vrot.lane.b32.xlu0 %v659, 17
  %v718 = vpop.permute.xlu0 %717
  %719 = vrot.lane.b32.xlu0 %v637, 17
  %v720 = vpop.permute.xlu0 %719
  %721 = vrot.lane.b32.xlu0 %v640, 17
  %v722 = vpop.permute.xlu0 %721
  %723 = vrot.lane.b32.xlu0 %v641, 17
  %v724 = vpop.permute.xlu0 %723
  %v725 = vsel %vm211, %v684, %v686
  %v726 = vsel %vm211, %v686, %v688
  %v727 = vsel %vm211, %v690, %v692
  %v728 = vsel %vm211, %v692, %v694
  %v729 = vsel %vm211, %v696, %v698
  %v730 = vsel %vm211, %v698, %v700
  %v731 = vsel %vm211, %v702, %v704
  %v732 = vsel %vm211, %v704, %v706
  %v733 = vsel %vm211, %v708, %v710
  %v734 = vsel %vm211, %v710, %v712
  %v735 = vsel %vm211, %v714, %v716
  %v736 = vsel %vm211, %v716, %v718
  %v737 = vsel %vm211, %v720, %v722
  %v738 = vsel %vm211, %v722, %v724
  %vm751 = vcmask 441344
  %v753 = vsel %vm751, %v31, 0
  %v755 = vsel %vm353, %v737, 0
  %v757 = vsel %vm353, %v738, 0
  %759 = vmatprep.subr.mxu0 %v726
  %760 = vmatpush1.msra.mxu0 %v725
  %761 = vmatprep.subr.mxu0 %v728
  %762 = vmatpush1.msra.mxu0 %v727
  %763 = vmatprep.subr.mxu0 %v730
  %764 = vmatpush1.msra.mxu0 %v729
  %765 = vmatprep.subr.mxu0 %v732
  %766 = vmatpush1.msra.mxu0 %v731
  %767 = vmatprep.subr.mxu0 %v734
  %768 = vmatpush1.msra.mxu0 %v733
  %769 = vmatprep.subr.mxu0 %v736
  %770 = vmatpush1.msra.mxu0 %v735
  %771 = vmatprep.subr.mxu0 %v757
  %772 = vmatpush1.msra.mxu0 %v755
  %773 = vmatprep.subr.mxu0 0.0
  %774 = vmatpush1.msra.mxu0 0.0
  %775 = vmatprep.subr.mxu0 0.0
  %776 = vmatpush1.msra.mxu0 0.0
  %777 = vmatprep.subr.mxu0 0.0
  %778 = vmatpush1.msra.mxu0 0.0
  %779 = vmatprep.subr.mxu0 0.0
  %780 = vmatpush1.msra.mxu0 0.0
  %781 = vmatprep.subr.mxu0 0.0
  %782 = vmatpush1.msra.mxu0 0.0
  %783 = vmatprep.subr.mxu0 0.0
  %784 = vmatpush1.msra.mxu0 0.0
  %785 = vmatprep.subr.mxu0 0.0
  %786 = vmatpush1.msra.mxu0 0.0
  %787 = vmatprep.subr.mxu0 0.0
  %788 = vmatpush1.msra.mxu0 0.0
  %789 = vmatprep.subr.mxu0 0.0
  %790 = vmatpush1.msra.mxu0 0.0
  %791 = vmatprep.subr.mxu0 0.0
  %792 = vmatpush1.msra.mxu0 0.0
  %793 = vmatprep.subr.mxu0 0.0
  %794 = vmatpush1.msra.mxu0 0.0
  %795 = vmatprep.subr.mxu0 0.0
  %796 = vmatpush1.msra.mxu0 0.0
  %797 = vmatprep.subr.mxu0 0.0
  %798 = vmatpush1.msra.mxu0 0.0
  %799 = vmatprep.subr.mxu0 0.0
  %800 = vmatpush1.msra.mxu0 0.0
  %801 = vmatprep.subr.mxu0 0.0
  %802 = vmatpush1.msra.mxu0 0.0
  %803 = vmatprep.subr.mxu0 0.0
  %804 = vmatpush1.msra.mxu0 0.0
  %805 = vmatprep.subr.mxu0 0.0
  %806 = vmatpush1.msra.mxu0 0.0
  %807 = vmatprep.subr.mxu0 0.0
  %808 = vmatpush1.msra.mxu0 0.0
  %809 = vmatprep.subr.mxu0 0.0
  %810 = vmatpush1.msra.mxu0 0.0
  %811 = vmatprep.subr.mxu0 0.0
  %812 = vmatpush1.msra.mxu0 0.0
  %813 = vmatprep.subr.mxu0 0.0
  %814 = vmatpush1.msra.mxu0 0.0
  %815 = vmatprep.subr.mxu0 0.0
  %816 = vmatpush1.msra.mxu0 0.0
  %817 = vmatprep.subr.mxu0 0.0
  %818 = vmatpush1.msra.mxu0 0.0
  %819 = vmatprep.subr.mxu0 0.0
  %820 = vmatpush1.msra.mxu0 0.0
  %821 = vmatprep.subr.mxu0 0.0
  %822 = vmatpush1.msra.mxu0 0.0
  %823 = vmatprep.mubr.f32.mxu0 0.0
  %824 = vmatmul.mubr.f32.gmra.mrb[0].mxu0 %v753
  %v825 = vpop.f32.mrb[0].mxu0
  %v826 = vadd.f32 %v663, %v825
  %v827 = vpop.f32.mrb[0].mxu0
  %v828 = vadd.f32 %v663, %v827
  %829 = vdwg.mxu0
  %v832 = vrot.slane %v27, 3
  %v833 = vrot.slane %v28, 3
  %v836 = vmul.f32 %v832, %v48
  %v837 = vmul.f32 %v833, %v46
  %v838 = vmul.f32 %v832, %v70
  %v839 = vmul.f32 %v833, %v68
  %v840 = vmul.f32 %v832, %v92
  %v841 = vmul.f32 %v833, %v90
  %v842 = vmul.f32 %v832, %v114
  %v843 = vmul.f32 %v833, %v112
  %v844 = vmul.f32 %v832, %v124
  %v845 = vmul.f32 %v833, %v128
  %v846 = vmul.f32 %v832, %v142
  %v847 = vmul.f32 %v833, %v146
  %v848 = vmul.f32 %v832, %v164
  %v849 = vmul.f32 %v833, %v168
  %v850 = vmul.f32 %v832, %v186
  %v851 = vmul.f32 %v833, %v190
  %v852 = vmul.f32 %v832, %v208
  %v853 = vmul.f32 %v833, %v212
  %v856 = vrot.slane %v838, 5
  %v857 = vrot.slane %v839, 5
  %858 = vrot.lane.b32.xlu0 %v856, 127
  %v859 = vpop.permute.xlu0 %858
  %860 = vrot.lane.b32.xlu0 %v857, 127
  %v861 = vpop.permute.xlu0 %860
  %v862 = vsel %vm113, %v226, %v859
  %v863 = vsel %vm113, %v859, %v861
  %v869 = vrot.slane %v840, 2
  %v870 = vrot.slane %v841, 2
  %871 = vrot.lane.b32.xlu0 %v869, 126
  %v872 = vpop.permute.xlu0 %871
  %873 = vrot.lane.b32.xlu0 %v870, 126
  %v874 = vpop.permute.xlu0 %873
  %v875 = vsel %vm248, %v243, %v872
  %v876 = vsel %vm248, %v872, %v874
  %v882 = vrot.slane %v842, 7
  %v883 = vrot.slane %v843, 7
  %884 = vrot.lane.b32.xlu0 %v882, 112
  %v885 = vpop.permute.xlu0 %884
  %886 = vrot.lane.b32.xlu0 %v883, 112
  %v887 = vpop.permute.xlu0 %886
  %v888 = vsel %vm69, %v261, %v885
  %v889 = vsel %vm69, %v885, %v887
  %v895 = vrot.slane %v844, 4
  %v896 = vrot.slane %v845, 4
  %897 = vrot.lane.b32.xlu0 %v895, 111
  %v898 = vpop.permute.xlu0 %897
  %899 = vrot.lane.b32.xlu0 %v896, 111
  %v900 = vpop.permute.xlu0 %899
  %v901 = vsel %vm47, %v898, %v900
  %v907 = vrot.slane %v846, 1
  %v908 = vrot.slane %v847, 1
  %909 = vrot.lane.b32.xlu0 %v907, 110
  %v910 = vpop.permute.xlu0 %909
  %911 = vrot.lane.b32.xlu0 %v908, 110
  %v912 = vpop.permute.xlu0 %911
  %v913 = vsel %vm295, %v910, %v912
  %v914 = vsel %vm295, %v912, %v294
  %v920 = vrot.slane %v848, 6
  %v921 = vrot.slane %v849, 6
  %922 = vrot.lane.b32.xlu0 %v920, 96
  %v923 = vpop.permute.xlu0 %922
  %924 = vrot.lane.b32.xlu0 %v921, 96
  %v925 = vpop.permute.xlu0 %924
  %v926 = vsel %vm313, %v923, %v925
  %v927 = vsel %vm313, %v925, %v312
  %v933 = vrot.slane %v850, 3
  %v934 = vrot.slane %v851, 3
  %935 = vrot.lane.b32.xlu0 %v933, 95
  %v936 = vpop.permute.xlu0 %935
  %937 = vrot.lane.b32.xlu0 %v934, 95
  %v938 = vpop.permute.xlu0 %937
  %v939 = vsel %vm331, %v936, %v938
  %v940 = vsel %vm331, %v938, %v330
  %946 = vrot.lane.b32.xlu0 %v852, 94
  %v947 = vpop.permute.xlu0 %946
  %948 = vrot.lane.b32.xlu0 %v853, 94
  %v949 = vpop.permute.xlu0 %948
  %v950 = vsel %vm346, %v947, %v949
  %v951 = vsel %vm346, %v949, %v345
  %v952 = vsel %vm349, %v52, %v862
  %v953 = vsel %vm349, %v836, %v863
  %v954 = vsel %vm349, %v837, %v861
  %v955 = vsel %vm353, %v952, %v875
  %v956 = vsel %vm353, %v953, %v876
  %v957 = vsel %vm353, %v954, %v874
  %v958 = vsel %vm357, %v875, %v888
  %v959 = vsel %vm357, %v876, %v889
  %v960 = vsel %vm357, %v874, %v887
  %v961 = vsel %vm361, %v958, %v898
  %v962 = vsel %vm361, %v959, %v901
  %v963 = vsel %vm361, %v960, %v900
  %v964 = vsel %vm365, %v961, %v910
  %v965 = vsel %vm365, %v962, %v913
  %v966 = vsel %vm365, %v963, %v914
  %v967 = vsel %vm369, %v910, %v923
  %v968 = vsel %vm369, %v913, %v926
  %v969 = vsel %vm369, %v914, %v927
  %v970 = vsel %vm373, %v967, %v936
  %v971 = vsel %vm373, %v968, %v939
  %v972 = vsel %vm373, %v969, %v940
  %982 = vrot.lane.b32.xlu0 %v955, 17
  %v983 = vpop.permute.xlu0 %982
  %984 = vrot.lane.b32.xlu0 %v956, 17
  %v985 = vpop.permute.xlu0 %984
  %986 = vrot.lane.b32.xlu0 %v957, 17
  %v987 = vpop.permute.xlu0 %986
  %988 = vrot.lane.b32.xlu0 %v964, 17
  %v989 = vpop.permute.xlu0 %988
  %990 = vrot.lane.b32.xlu0 %v965, 17
  %v991 = vpop.permute.xlu0 %990
  %992 = vrot.lane.b32.xlu0 %v966, 17
  %v993 = vpop.permute.xlu0 %992
  %994 = vrot.lane.b32.xlu0 %v970, 17
  %v995 = vpop.permute.xlu0 %994
  %996 = vrot.lane.b32.xlu0 %v971, 17
  %v997 = vpop.permute.xlu0 %996
  %998 = vrot.lane.b32.xlu0 %v972, 17
  %v999 = vpop.permute.xlu0 %998
  %1000 = vrot.lane.b32.xlu0 %v947, 17
  %v1001 = vpop.permute.xlu0 %1000
  %1002 = vrot.lane.b32.xlu0 %v950, 17
  %v1003 = vpop.permute.xlu0 %1002
  %1004 = vrot.lane.b32.xlu0 %v951, 17
  %v1005 = vpop.permute.xlu0 %1004
  %v1006 = vsel %vm211, %v983, %v985
  %v1007 = vsel %vm211, %v985, %v987
  %v1008 = vsel %vm211, %v989, %v991
  %v1009 = vsel %vm211, %v991, %v993
  %v1010 = vsel %vm211, %v995, %v997
  %v1011 = vsel %vm211, %v997, %v999
  %v1012 = vsel %vm211, %v1001, %v1003
  %v1013 = vsel %vm211, %v1003, %v1005
  %v1020 = vsel %vm349, %v1012, 0
  %v1022 = vsel %vm349, %v1013, 0
  %1024 = vmatprep.subr.mxu0 %v1007
  %1025 = vmatpush1.msra.mxu0 %v1006
  %1026 = vmatprep.subr.mxu0 %v1009
  %1027 = vmatpush1.msra.mxu0 %v1008
  %1028 = vmatprep.subr.mxu0 %v1011
  %1029 = vmatpush1.msra.mxu0 %v1010
  %1030 = vmatprep.subr.mxu0 %v1022
  %1031 = vmatpush1.msra.mxu0 %v1020
  %1032 = vmatprep.subr.mxu0 0.0
  %1033 = vmatpush1.msra.mxu0 0.0
  %1034 = vmatprep.subr.mxu0 0.0
  %1035 = vmatpush1.msra.mxu0 0.0
  %1036 = vmatprep.subr.mxu0 0.0
  %1037 = vmatpush1.msra.mxu0 0.0
  %1038 = vmatprep.subr.mxu0 0.0
  %1039 = vmatpush1.msra.mxu0 0.0
  %1040 = vmatprep.subr.mxu0 0.0
  %1041 = vmatpush1.msra.mxu0 0.0
  %1042 = vmatprep.subr.mxu0 0.0
  %1043 = vmatpush1.msra.mxu0 0.0
  %1044 = vmatprep.subr.mxu0 0.0
  %1045 = vmatpush1.msra.mxu0 0.0
  %1046 = vmatprep.subr.mxu0 0.0
  %1047 = vmatpush1.msra.mxu0 0.0
  %1048 = vmatprep.subr.mxu0 0.0
  %1049 = vmatpush1.msra.mxu0 0.0
  %1050 = vmatprep.subr.mxu0 0.0
  %1051 = vmatpush1.msra.mxu0 0.0
  %1052 = vmatprep.subr.mxu0 0.0
  %1053 = vmatpush1.msra.mxu0 0.0
  %1054 = vmatprep.subr.mxu0 0.0
  %1055 = vmatpush1.msra.mxu0 0.0
  %1056 = vmatprep.subr.mxu0 0.0
  %1057 = vmatpush1.msra.mxu0 0.0
  %1058 = vmatprep.subr.mxu0 0.0
  %1059 = vmatpush1.msra.mxu0 0.0
  %1060 = vmatprep.subr.mxu0 0.0
  %1061 = vmatpush1.msra.mxu0 0.0
  %1062 = vmatprep.subr.mxu0 0.0
  %1063 = vmatpush1.msra.mxu0 0.0
  %1064 = vmatprep.subr.mxu0 0.0
  %1065 = vmatpush1.msra.mxu0 0.0
  %1066 = vmatprep.subr.mxu0 0.0
  %1067 = vmatpush1.msra.mxu0 0.0
  %1068 = vmatprep.subr.mxu0 0.0
  %1069 = vmatpush1.msra.mxu0 0.0
  %1070 = vmatprep.subr.mxu0 0.0
  %1071 = vmatpush1.msra.mxu0 0.0
  %1072 = vmatprep.subr.mxu0 0.0
  %1073 = vmatpush1.msra.mxu0 0.0
  %1074 = vmatprep.subr.mxu0 0.0
  %1075 = vmatpush1.msra.mxu0 0.0
  %1076 = vmatprep.subr.mxu0 0.0
  %1077 = vmatpush1.msra.mxu0 0.0
  %1078 = vmatprep.subr.mxu0 0.0
  %1079 = vmatpush1.msra.mxu0 0.0
  %1080 = vmatprep.subr.mxu0 0.0
  %1081 = vmatpush1.msra.mxu0 0.0
  %1082 = vmatprep.subr.mxu0 0.0
  %1083 = vmatpush1.msra.mxu0 0.0
  %1084 = vmatprep.subr.mxu0 0.0
  %1085 = vmatpush1.msra.mxu0 0.0
  %1086 = vmatprep.subr.mxu0 0.0
  %1087 = vmatpush1.msra.mxu0 0.0
  %1088 = vmatprep.mubr.f32.mxu0 0.0
  %1089 = vmatmul.mubr.f32.gmra.mrb[0].mxu0 %v431
  %v1090 = vpop.f32.mrb[0].mxu0
  %v1091 = vadd.f32 %v380, %v1090
  %v1092 = vpop.f32.mrb[0].mxu0
  %v1093 = vadd.f32 %v380, %v1092
  %1094 = vdwg.mxu0
  %v1095 = vmax.f32 %v1091, 0.0
  %v1096 = vmax.f32 %v1093, 0.0
  %v1097 = vmul.f32 %v1095, %v48
  %v1098 = vmul.f32 %v1096, %v46
  %v1099 = vmul.f32 %v1095, %v70
  %v1100 = vmul.f32 %v1096, %v68
  %v1101 = vmul.f32 %v1095, %v92
  %v1102 = vmul.f32 %v1096, %v90
  %v1103 = vmul.f32 %v1095, %v114
  %v1104 = vmul.f32 %v1096, %v112
  %v1105 = vmul.f32 %v1095, %v124
  %v1106 = vmul.f32 %v1096, %v128
  %v1107 = vmul.f32 %v1095, %v142
  %v1108 = vmul.f32 %v1096, %v146
  %v1109 = vmul.f32 %v1095, %v164
  %v1110 = vmul.f32 %v1096, %v168
  %v1111 = vmul.f32 %v1095, %v186
  %v1112 = vmul.f32 %v1096, %v190
  %v1113 = vmul.f32 %v1095, %v208
  %v1114 = vmul.f32 %v1096, %v212
  %v1117 = vrot.slane %v1099, 2
  %v1118 = vrot.slane %v1100, 2
  %1119 = vrot.lane.b32.xlu0 %v1117, 127
  %v1120 = vpop.permute.xlu0 %1119
  %1121 = vrot.lane.b32.xlu0 %v1118, 127
  %v1122 = vpop.permute.xlu0 %1121
  %v1123 = vsel %vm113, %v534, %v1120
  %v1124 = vsel %vm113, %v1120, %v1122
  %v1130 = vrot.slane %v1101, 4
  %v1131 = vrot.slane %v1102, 4
  %1132 = vrot.lane.b32.xlu0 %v1130, 126
  %v1133 = vpop.permute.xlu0 %1132
  %1134 = vrot.lane.b32.xlu0 %v1131, 126
  %v1135 = vpop.permute.xlu0 %1134
  %v1136 = vsel %vm248, %v550, %v1133
  %v1137 = vsel %vm248, %v1133, %v1135
  %v1143 = vrot.slane %v1103, 6
  %v1144 = vrot.slane %v1104, 6
  %1145 = vrot.lane.b32.xlu0 %v1143, 112
  %v1146 = vpop.permute.xlu0 %1145
  %1147 = vrot.lane.b32.xlu0 %v1144, 112
  %v1148 = vpop.permute.xlu0 %1147
  %v1149 = vsel %vm69, %v566, %v1146
  %v1150 = vsel %vm69, %v1146, %v1148
  %1156 = vrot.lane.b32.xlu0 %v1105, 111
  %v1157 = vpop.permute.xlu0 %1156
  %1158 = vrot.lane.b32.xlu0 %v1106, 111
  %v1159 = vpop.permute.xlu0 %1158
  %v1160 = vsel %vm47, %v1157, %v1159
  %v1166 = vrot.slane %v1107, 2
  %v1167 = vrot.slane %v1108, 2
  %1168 = vrot.lane.b32.xlu0 %v1166, 110
  %v1169 = vpop.permute.xlu0 %1168
  %1170 = vrot.lane.b32.xlu0 %v1167, 110
  %v1171 = vpop.permute.xlu0 %1170
  %v1172 = vsel %vm295, %v1169, %v1171
  %v1173 = vsel %vm295, %v1171, %v596
  %v1179 = vrot.slane %v1109, 4
  %v1180 = vrot.slane %v1110, 4
  %1181 = vrot.lane.b32.xlu0 %v1179, 96
  %v1182 = vpop.permute.xlu0 %1181
  %1183 = vrot.lane.b32.xlu0 %v1180, 96
  %v1184 = vpop.permute.xlu0 %1183
  %v1185 = vsel %vm313, %v1182, %v1184
  %v1186 = vsel %vm313, %v1184, %v612
  %v1192 = vrot.slane %v1111, 6
  %v1193 = vrot.slane %v1112, 6
  %1194 = vrot.lane.b32.xlu0 %v1192, 95
  %v1195 = vpop.permute.xlu0 %1194
  %1196 = vrot.lane.b32.xlu0 %v1193, 95
  %v1197 = vpop.permute.xlu0 %1196
  %v1198 = vsel %vm331, %v1195, %v1197
  %v1199 = vsel %vm331, %v1197, %v628
  %1205 = vrot.lane.b32.xlu0 %v1113, 94
  %v1206 = vpop.permute.xlu0 %1205
  %1207 = vrot.lane.b32.xlu0 %v1114, 94
  %v1208 = vpop.permute.xlu0 %1207
  %v1209 = vsel %vm346, %v1206, %v1208
  %v1210 = vsel %vm346, %v1208, %v345
  %v1211 = vsel %vm353, %v52, %v1123
  %v1212 = vsel %vm353, %v1097, %v1124
  %v1213 = vsel %vm353, %v1098, %v1122
  %v1214 = vsel %vm361, %v1123, %v1136
  %v1215 = vsel %vm361, %v1124, %v1137
  %v1216 = vsel %vm361, %v1122, %v1135
  %v1217 = vsel %vm369, %v1136, %v1149
  %v1218 = vsel %vm369, %v1137, %v1150
  %v1219 = vsel %vm369, %v1135, %v1148
  %v1220 = vsel %vm353, %v1157, %v1169
  %v1221 = vsel %vm353, %v1160, %v1172
  %v1222 = vsel %vm353, %v1159, %v1173
  %v1223 = vsel %vm361, %v1169, %v1182
  %v1224 = vsel %vm361, %v1172, %v1185
  %v1225 = vsel %vm361, %v1173, %v1186
  %v1226 = vsel %vm369, %v1182, %v1195
  %v1227 = vsel %vm369, %v1185, %v1198
  %v1228 = vsel %vm369, %v1186, %v1199
  %1247 = vrot.lane.b32.xlu0 %v1211, 17
  %v1248 = vpop.permute.xlu0 %1247
  %1249 = vrot.lane.b32.xlu0 %v1212, 17
  %v1250 = vpop.permute.xlu0 %1249
  %1251 = vrot.lane.b32.xlu0 %v1213, 17
  %v1252 = vpop.permute.xlu0 %1251
  %1253 = vrot.lane.b32.xlu0 %v1214, 17
  %v1254 = vpop.permute.xlu0 %1253
  %1255 = vrot.lane.b32.xlu0 %v1215, 17
  %v1256 = vpop.permute.xlu0 %1255
  %1257 = vrot.lane.b32.xlu0 %v1216, 17
  %v1258 = vpop.permute.xlu0 %1257
  %1259 = vrot.lane.b32.xlu0 %v1217, 17
  %v1260 = vpop.permute.xlu0 %1259
  %1261 = vrot.lane.b32.xlu0 %v1218, 17
  %v1262 = vpop.permute.xlu0 %1261
  %1263 = vrot.lane.b32.xlu0 %v1219, 17
  %v1264 = vpop.permute.xlu0 %1263
  %1265 = vrot.lane.b32.xlu0 %v1220, 17
  %v1266 = vpop.permute.xlu0 %1265
  %1267 = vrot.lane.b32.xlu0 %v1221, 17
  %v1268 = vpop.permute.xlu0 %1267
  %1269 = vrot.lane.b32.xlu0 %v1222, 17
  %v1270 = vpop.permute.xlu0 %1269
  %1271 = vrot.lane.b32.xlu0 %v1223, 17
  %v1272 = vpop.permute.xlu0 %1271
  %1273 = vrot.lane.b32.xlu0 %v1224, 17
  %v1274 = vpop.permute.xlu0 %1273
  %1275 = vrot.lane.b32.xlu0 %v1225, 17
  %v1276 = vpop.permute.xlu0 %1275
  %1277 = vrot.lane.b32.xlu0 %v1226, 17
  %v1278 = vpop.permute.xlu0 %1277
  %1279 = vrot.lane.b32.xlu0 %v1227, 17
  %v1280 = vpop.permute.xlu0 %1279
  %1281 = vrot.lane.b32.xlu0 %v1228, 17
  %v1282 = vpop.permute.xlu0 %1281
  %1283 = vrot.lane.b32.xlu0 %v1206, 17
  %v1284 = vpop.permute.xlu0 %1283
  %1285 = vrot.lane.b32.xlu0 %v1209, 17
  %v1286 = vpop.permute.xlu0 %1285
  %1287 = vrot.lane.b32.xlu0 %v1210, 17
  %v1288 = vpop.permute.xlu0 %1287
  %v1289 = vsel %vm211, %v1248, %v1250
  %v1290 = vsel %vm211, %v1250, %v1252
  %v1291 = vsel %vm211, %v1254, %v1256
  %v1292 = vsel %vm211, %v1256, %v1258
  %v1293 = vsel %vm211, %v1260, %v1262
  %v1294 = vsel %vm211, %v1262, %v1264
  %v1295 = vsel %vm211, %v1266, %v1268
  %v1296 = vsel %vm211, %v1268, %v1270
  %v1297 = vsel %vm211, %v1272, %v1274
  %v1298 = vsel %vm211, %v1274, %v1276
  %v1299 = vsel %vm211, %v1278, %v1280
  %v1300 = vsel %vm211, %v1280, %v1282
  %v1301 = vsel %vm211, %v1284, %v1286
  %v1302 = vsel %vm211, %v1286, %v1288
  %v1315 = vsel %vm353, %v1301, 0
  %v1317 = vsel %vm353, %v1302, 0
  %1319 = vmatprep.subr.mxu0 %v1290
  %1320 = vmatpush1.msra.mxu0 %v1289
  %1321 = vmatprep.subr.mxu0 %v1292
  %1322 = vmatpush1.msra.mxu0 %v1291
  %1323 = vmatprep.subr.mxu0 %v1294
  %1324 = vmatpush1.msra.mxu0 %v1293
  %1325 = vmatprep.subr.mxu0 %v1296
  %1326 = vmatpush1.msra.mxu0 %v1295
  %1327 = vmatprep.subr.mxu0 %v1298
  %1328 = vmatpush1.msra.mxu0 %v1297
  %1329 = vmatprep.subr.mxu0 %v1300
  %1330 = vmatpush1.msra.mxu0 %v1299
  %1331 = vmatprep.subr.mxu0 %v1317
  %1332 = vmatpush1.msra.mxu0 %v1315
  %1333 = vmatprep.subr.mxu0 0.0
  %1334 = vmatpush1.msra.mxu0 0.0
  %1335 = vmatprep.subr.mxu0 0.0
  %1336 = vmatpush1.msra.mxu0 0.0
  %1337 = vmatprep.subr.mxu0 0.0
  %1338 = vmatpush1.msra.mxu0 0.0
  %1339 = vmatprep.subr.mxu0 0.0
  %1340 = vmatpush1.msra.mxu0 0.0
  %1341 = vmatprep.subr.mxu0 0.0
  %1342 = vmatpush1.msra.mxu0 0.0
  %1343 = vmatprep.subr.mxu0 0.0
  %1344 = vmatpush1.msra.mxu0 0.0
  %1345 = vmatprep.subr.mxu0 0.0
  %1346 = vmatpush1.msra.mxu0 0.0
  %1347 = vmatprep.subr.mxu0 0.0
  %1348 = vmatpush1.msra.mxu0 0.0
  %1349 = vmatprep.subr.mxu0 0.0
  %1350 = vmatpush1.msra.mxu0 0.0
  %1351 = vmatprep.subr.mxu0 0.0
  %1352 = vmatpush1.msra.mxu0 0.0
  %1353 = vmatprep.subr.mxu0 0.0
  %1354 = vmatpush1.msra.mxu0 0.0
  %1355 = vmatprep.subr.mxu0 0.0
  %1356 = vmatpush1.msra.mxu0 0.0
  %1357 = vmatprep.subr.mxu0 0.0
  %1358 = vmatpush1.msra.mxu0 0.0
  %1359 = vmatprep.subr.mxu0 0.0
  %1360 = vmatpush1.msra.mxu0 0.0
  %1361 = vmatprep.subr.mxu0 0.0
  %1362 = vmatpush1.msra.mxu0 0.0
  %1363 = vmatprep.subr.mxu0 0.0
  %1364 = vmatpush1.msra.mxu0 0.0
  %1365 = vmatprep.subr.mxu0 0.0
  %1366 = vmatpush1.msra.mxu0 0.0
  %1367 = vmatprep.subr.mxu0 0.0
  %1368 = vmatpush1.msra.mxu0 0.0
  %1369 = vmatprep.subr.mxu0 0.0
  %1370 = vmatpush1.msra.mxu0 0.0
  %1371 = vmatprep.subr.mxu0 0.0
  %1372 = vmatpush1.msra.mxu0 0.0
  %1373 = vmatprep.subr.mxu0 0.0
  %1374 = vmatpush1.msra.mxu0 0.0
  %1375 = vmatprep.subr.mxu0 0.0
  %1376 = vmatpush1.msra.mxu0 0.0
  %1377 = vmatprep.subr.mxu0 0.0
  %1378 = vmatpush1.msra.mxu0 0.0
  %1379 = vmatprep.subr.mxu0 0.0
  %1380 = vmatpush1.msra.mxu0 0.0
  %1381 = vmatprep.subr.mxu0 0.0
  %1382 = vmatpush1.msra.mxu0 0.0
  %1383 = vmatprep.mubr.f32.mxu0 0.0
  %1384 = vmatmul.mubr.f32.gmra.mrb[0].mxu0 %v753
  %v1385 = vpop.f32.mrb[0].mxu0
  %v1386 = vadd.f32 %v663, %v1385
  %v1387 = vpop.f32.mrb[0].mxu0
  %v1388 = vadd.f32 %v663, %v1387
  %1389 = vdwg.mxu0
  %v1392 = vrot.slane %v1386, 2
  %v1393 = vrot.slane %v1388, 2
  %v1396 = vsel %vm353, %v826, %v1392
  %v1397 = vsel %vm353, %v828, %v1393
  %1398 = vst [vmem:[%s6] sm:$0xff] %v1396
  %1399 = vst [vmem:[%s6 + $0x8] sm:$0xff] %v1397
  %1400 = vst [vmem:[%s6 + $0x10] sm:$0xf] %v1392
  %1401 = vst [vmem:[%s6 + $0x18] sm:$0xf] %v1393
  // Predicated region
  $region26: #{simple_conv_model.1} parent=0 // pred_check
    _
  $region27: #{simple_conv_model.1} parent=0 // pred_check_branch
    %1403 = sbr.rel (0) target = $region29
  $region28: #{simple_conv_model.1} parent=0 // pred_region
    _
  $region29: #{simple_conv_model.1} parent=0 // pred_fallthru
    _
  // Predicated region
  $region30: #{simple_conv_model.1} parent=0 // pred_check
    _
  $region31: #{simple_conv_model.1} parent=0 // pred_check_branch
    %1405 = sbr.rel (0) target = $region33
  $region32: #{simple_conv_model.1} parent=0 // pred_region
    _
  $region33: #{simple_conv_model.1} parent=0 // pred_fallthru
    _

</llo_original>
